<compile_context>
chip_gen: v7x
topology: tpu7x:2x2x1
jax: 0.10.0
libtpu: 0.0.40
codegen_flags: <defaults>
</compile_context>

<pallas_src>
import functools

import numpy as np
import jax
import jax.numpy as jnp
from jax import lax
from jax.experimental import pallas as pl
from jax.experimental.pallas import tpu as pltpu


def _prepare_taps(kernel, normalize, flip):
    """1-D taps for the separable blur; (k/s) ⊗ (k/s) == (k ⊗ k)/sum(k ⊗ k)."""
    k = np.asarray(kernel, dtype=np.float32).reshape(-1)
    if k.size % 2 != 1:
        # TODO(synk): even-length blur kernels (module default [1,2,1] is odd).
        raise NotImplementedError("odd-length blur kernels only")
    if flip:
        k = k[::-1]
    if normalize:
        k = k / k.sum()
    return tuple(float(v) for v in k)


def _blur_kernel_body(x_ref, o_ref, *, taps, H, W, Ho, Wo, stride):
    cb, hw = x_ref.shape
    assert hw == H * W
    r = (len(taps) - 1) // 2

    # Single hoisted upcast (bf16 inputs widened once, not per tap).
    x = x_ref[...].astype(jnp.float32)

    flat = lax.broadcasted_iota(jnp.int32, (cb, hw), 1)   # position in image
    col = flat % W                                        # column index

    def tap_sum(v, neighbor, is_valid):
        # sum_d taps[d+r] * v[:, j + neighbor(d)], zero outside the image.
        acc = taps[r] * v
        for mag in range(1, r + 1):
            for d in (-mag, mag):
                shifted = pltpu.roll(v, shift=(-neighbor(d)) % hw, axis=1)
                acc = acc + taps[r + d] * jnp.where(is_valid(d), shifted, 0.0)
        return acc

    # Pass 1: horizontal blur (taps along W).  Zero padding at the left/right
    # image borders is a lane mask -- no padded copy ever hits HBM.
    h = tap_sum(
        x,
        neighbor=lambda d: d,
        is_valid=lambda d: (col + d >= 0) & (col + d < W),
    )

    # Pass 2: vertical blur (taps along H == lane offsets of d*W in the
    # flattened axis).  Zero padding at the top/bottom borders.
    out = tap_sum(
        h,
        neighbor=lambda d: d * W,
        is_valid=lambda d: (flat + d * W >= 0) & (flat + d * W < hw),
    )

    if stride == 1:
        o_ref[...] = out.astype(o_ref.dtype)
    else:
        # Fused stride-s subsampling: a 0/1 selection matmul on the otherwise
        # idle MXU picks flattened positions io*s*W + jo*s, so only the
        # strided output is ever written to HBM.
        # TODO(synk): for very large H*W, replace the selection matmul with
        # halo row-tiling + strided row computation.
        p = lax.broadcasted_iota(jnp.int32, (hw, Ho * Wo), 0)
        q = lax.broadcasted_iota(jnp.int32, (hw, Ho * Wo), 1)
        sel = jnp.where(p == (q // Wo) * (stride * W) + (q % Wo) * stride,
                        1.0, 0.0)
        sub = jnp.dot(out, sel, preferred_element_type=jnp.float32)
        o_ref[...] = sub.astype(o_ref.dtype)


def _pick_block_rows(nc, hw, itemsize, vmem_budget_bytes=12 << 20):
    """Channels (N*C rows) per grid step: as big as VMEM comfortably allows,
    but keep a handful of grid steps so v7x's 2 TensorCores both get work."""
    # double-buffered in/out blocks in the native dtype + live f32 temps
    per_row = hw * (4 * itemsize + 16)
    cb_mem = max(1, vmem_budget_bytes // per_row)
    cb_par = max(8, -(-nc // 8))          # aim for >= ~8 grid steps
    cb = min(nc, cb_mem, cb_par)
    if cb >= nc:
        return nc
    if cb < 8:
        # TODO(synk): very large H*W: row-tile the image with a 1-row halo
        # instead of whole-image rows (v7x only has 64 MiB VMEM).
        return 8 if nc >= 8 else nc
    return (cb // 8) * 8


def blur_layer(x, kernel=None, normalize=True, flip=False, stride=1):
    """Equivalent of BlurLayer.forward for NCHW input `x`."""
    if kernel is None:
        kernel = [1.0, 2.0, 1.0]
    taps = _prepare_taps(kernel, normalize, flip)
    r = (len(taps) - 1) // 2

    N, C, H, W = x.shape
    Ho = (H + 2 * r - len(taps)) // stride + 1
    Wo = (W + 2 * r - len(taps)) // stride + 1
    nc, hw, howo = N * C, H * W, Ho * Wo

    # Free (contiguous) reshape: each channel image becomes one lane-dense
    # row of length H*W -- no transpose / pad pass through HBM.
    xf = x.reshape(nc, hw)

    cb = _pick_block_rows(nc, hw, jnp.dtype(x.dtype).itemsize)
    grid = (pl.cdiv(nc, cb),)

    body = functools.partial(_blur_kernel_body, taps=taps, H=H, W=W,
                             Ho=Ho, Wo=Wo, stride=stride)
    out = pl.pallas_call(
        body,
        out_shape=jax.ShapeDtypeStruct((nc, howo), x.dtype),
        grid=grid,
        in_specs=[pl.BlockSpec((cb, hw), lambda i: (i, 0))],
        out_specs=pl.BlockSpec((cb, howo), lambda i: (i, 0)),
        compiler_params=pltpu.CompilerParams(
            dimension_semantics=("parallel",)),
    )(xf)
    return out.reshape(N, C, Ho, Wo)


def _reference_blur(x, kernel=None, normalize=True, flip=False, stride=1):
    """Pure-JAX depthwise-conv reference (mirrors nn.functional.conv2d)."""
    if kernel is None:
        kernel = [1.0, 2.0, 1.0]
    k = np.asarray(kernel, dtype=np.float32)
    k2 = k[:, None] * k[None, :]
    if normalize:
        k2 = k2 / k2.sum()
    if flip:
        k2 = np.ascontiguousarray(k2[::-1, ::-1])
    C = x.shape[1]
    r = (k2.shape[0] - 1) // 2
    w = jnp.broadcast_to(jnp.asarray(k2)[None, None], (C, 1, *k2.shape))
    return lax.conv_general_dilated(
        x, w,
        window_strides=(stride, stride),
        padding=((r, r), (r, r)),
        dimension_numbers=("NCHW", "OIHW", "NCHW"),
        feature_group_count=C,
    )


if __name__ == "__main__":
    key = jax.random.PRNGKey(0)
    x = jax.random.normal(key, (2, 4, 16, 16), dtype=jnp.float32)

    # Default config (kernel=[1,2,1], normalize=True, stride=1).
    out = jax.block_until_ready(blur_layer(x))
    ref = jax.block_until_ready(_reference_blur(x))
    assert out.shape == ref.shape == (2, 4, 16, 16)
    assert np.allclose(np.asarray(out), np.asarray(ref), atol=1e-5, rtol=1e-5)

    # Fused-stride path (ProgGAN downsample case).
    out2 = jax.block_until_ready(blur_layer(x, stride=2))
    ref2 = jax.block_until_ready(_reference_blur(x, stride=2))
    assert out2.shape == ref2.shape == (2, 4, 8, 8)
    assert np.allclose(np.asarray(out2), np.asarray(ref2), atol=1e-5, rtol=1e-5)

    print("KERNEL_OK")
</pallas_src>

<mosaic_0001>
module attributes {stable_mosaic.version = 11 : i64} {
  func.func @_blur_kernel_body(%arg0: i32, %arg1: memref<8x256xf32, #tpu.memory_space<vmem>>, %arg2: memref<8x256xf32, #tpu.memory_space<vmem>>) attributes {dimension_semantics = [#tpu.dimension_semantics<parallel>], iteration_bounds = array<i64: 1>, scalar_prefetch = 0 : i64, scratch_operands = 0 : i64, tpu.core_type = #tpu.core_type<tc>, window_params = [{transform_indices = @transform_0, window_bounds = array<i64: 8, 256>}, {transform_indices = @transform_1, window_bounds = array<i64: 8, 256>}]} {
    %c0 = arith.constant 0 : index
    %c0_0 = arith.constant 0 : index
    %0 = vector.load %arg1[%c0, %c0_0] : memref<8x256xf32, #tpu.memory_space<vmem>>, vector<8x256xf32>
    %1 = tpu.iota {dimensions = array<i32: 1>} : vector<8x256xi32>
    %c16_i32 = arith.constant 16 : i32
    %c0_i32 = arith.constant 0 : i32
    %2 = arith.cmpi eq, %c16_i32, %c0_i32 : i32
    %c1_i32 = arith.constant 1 : i32
    %3 = arith.select %2, %c1_i32, %c16_i32 : i32
    %4 = vector.broadcast %3 : i32 to vector<8x256xi32>
    %5 = arith.remsi %1, %4 : vector<8x256xi32>
    %c0_i32_1 = arith.constant 0 : i32
    %6 = vector.broadcast %c0_i32_1 : i32 to vector<8x256xi32>
    %7 = arith.cmpi ne, %5, %6 : vector<8x256xi32>
    %c0_i32_2 = arith.constant 0 : i32
    %8 = vector.broadcast %c0_i32_2 : i32 to vector<8x256xi32>
    %9 = arith.cmpi slt, %5, %8 : vector<8x256xi32>
    %c0_i32_3 = arith.constant 0 : i32
    %10 = arith.cmpi slt, %3, %c0_i32_3 : i32
    %11 = vector.broadcast %10 : i1 to vector<8x256xi1>
    %12 = vector.broadcast %11 : vector<8x256xi1> to vector<8x256xi1>
    %13 = arith.xori %9, %12 : vector<8x256xi1>
    %14 = arith.andi %13, %7 : vector<8x256xi1>
    %15 = vector.broadcast %3 : i32 to vector<8x256xi32>
    %16 = arith.addi %5, %15 : vector<8x256xi32>
    %17 = arith.select %14, %16, %5 : vector<8x256xi1>, vector<8x256xi32>
    %cst = arith.constant 5.000000e-01 : f32
    %18 = vector.broadcast %cst : f32 to vector<8x256xf32>
    %19 = arith.mulf %18, %0 : vector<8x256xf32>
    %c1_i32_4 = arith.constant 1 : i32
    %20 = tpu.dynamic_rotate %0 by %c1_i32_4 dim 1 : vector<8x256xf32>, i32 -> vector<8x256xf32>
    %c-1_i32 = arith.constant -1 : i32
    %21 = vector.broadcast %c-1_i32 : i32 to vector<8x256xi32>
    %22 = arith.addi %17, %21 : vector<8x256xi32>
    %c0_i32_5 = arith.constant 0 : i32
    %23 = vector.broadcast %c0_i32_5 : i32 to vector<8x256xi32>
    %24 = arith.cmpi sge, %22, %23 : vector<8x256xi32>
    %c-1_i32_6 = arith.constant -1 : i32
    %25 = vector.broadcast %c-1_i32_6 : i32 to vector<8x256xi32>
    %26 = arith.addi %17, %25 : vector<8x256xi32>
    %c16_i32_7 = arith.constant 16 : i32
    %27 = vector.broadcast %c16_i32_7 : i32 to vector<8x256xi32>
    %28 = arith.cmpi slt, %26, %27 : vector<8x256xi32>
    %29 = arith.andi %24, %28 : vector<8x256xi1>
    %cst_8 = arith.constant 0.000000e+00 : f32
    %30 = vector.broadcast %cst_8 : f32 to vector<8x256xf32>
    %31 = arith.select %29, %20, %30 : vector<8x256xi1>, vector<8x256xf32>
    %cst_9 = arith.constant 2.500000e-01 : f32
    %32 = vector.broadcast %cst_9 : f32 to vector<8x256xf32>
    %33 = arith.mulf %32, %31 : vector<8x256xf32>
    %34 = arith.addf %19, %33 : vector<8x256xf32>
    %c255_i32 = arith.constant 255 : i32
    %35 = tpu.dynamic_rotate %0 by %c255_i32 dim 1 : vector<8x256xf32>, i32 -> vector<8x256xf32>
    %c1_i32_10 = arith.constant 1 : i32
    %36 = vector.broadcast %c1_i32_10 : i32 to vector<8x256xi32>
    %37 = arith.addi %17, %36 : vector<8x256xi32>
    %c0_i32_11 = arith.constant 0 : i32
    %38 = vector.broadcast %c0_i32_11 : i32 to vector<8x256xi32>
    %39 = arith.cmpi sge, %37, %38 : vector<8x256xi32>
    %c1_i32_12 = arith.constant 1 : i32
    %40 = vector.broadcast %c1_i32_12 : i32 to vector<8x256xi32>
    %41 = arith.addi %17, %40 : vector<8x256xi32>
    %c16_i32_13 = arith.constant 16 : i32
    %42 = vector.broadcast %c16_i32_13 : i32 to vector<8x256xi32>
    %43 = arith.cmpi slt, %41, %42 : vector<8x256xi32>
    %44 = arith.andi %39, %43 : vector<8x256xi1>
    %cst_14 = arith.constant 0.000000e+00 : f32
    %45 = vector.broadcast %cst_14 : f32 to vector<8x256xf32>
    %46 = arith.select %44, %35, %45 : vector<8x256xi1>, vector<8x256xf32>
    %cst_15 = arith.constant 2.500000e-01 : f32
    %47 = vector.broadcast %cst_15 : f32 to vector<8x256xf32>
    %48 = arith.mulf %47, %46 : vector<8x256xf32>
    %49 = arith.addf %34, %48 : vector<8x256xf32>
    %cst_16 = arith.constant 5.000000e-01 : f32
    %50 = vector.broadcast %cst_16 : f32 to vector<8x256xf32>
    %51 = arith.mulf %50, %49 : vector<8x256xf32>
    %c16_i32_17 = arith.constant 16 : i32
    %52 = tpu.dynamic_rotate %49 by %c16_i32_17 dim 1 : vector<8x256xf32>, i32 -> vector<8x256xf32>
    %c-16_i32 = arith.constant -16 : i32
    %53 = vector.broadcast %c-16_i32 : i32 to vector<8x256xi32>
    %54 = arith.addi %1, %53 : vector<8x256xi32>
    %c0_i32_18 = arith.constant 0 : i32
    %55 = vector.broadcast %c0_i32_18 : i32 to vector<8x256xi32>
    %56 = arith.cmpi sge, %54, %55 : vector<8x256xi32>
    %c-16_i32_19 = arith.constant -16 : i32
    %57 = vector.broadcast %c-16_i32_19 : i32 to vector<8x256xi32>
    %58 = arith.addi %1, %57 : vector<8x256xi32>
    %c256_i32 = arith.constant 256 : i32
    %59 = vector.broadcast %c256_i32 : i32 to vector<8x256xi32>
    %60 = arith.cmpi slt, %58, %59 : vector<8x256xi32>
    %61 = arith.andi %56, %60 : vector<8x256xi1>
    %cst_20 = arith.constant 0.000000e+00 : f32
    %62 = vector.broadcast %cst_20 : f32 to vector<8x256xf32>
    %63 = arith.select %61, %52, %62 : vector<8x256xi1>, vector<8x256xf32>
    %cst_21 = arith.constant 2.500000e-01 : f32
    %64 = vector.broadcast %cst_21 : f32 to vector<8x256xf32>
    %65 = arith.mulf %64, %63 : vector<8x256xf32>
    %66 = arith.addf %51, %65 : vector<8x256xf32>
    %c240_i32 = arith.constant 240 : i32
    %67 = tpu.dynamic_rotate %49 by %c240_i32 dim 1 : vector<8x256xf32>, i32 -> vector<8x256xf32>
    %c16_i32_22 = arith.constant 16 : i32
    %68 = vector.broadcast %c16_i32_22 : i32 to vector<8x256xi32>
    %69 = arith.addi %1, %68 : vector<8x256xi32>
    %c0_i32_23 = arith.constant 0 : i32
    %70 = vector.broadcast %c0_i32_23 : i32 to vector<8x256xi32>
    %71 = arith.cmpi sge, %69, %70 : vector<8x256xi32>
    %c16_i32_24 = arith.constant 16 : i32
    %72 = vector.broadcast %c16_i32_24 : i32 to vector<8x256xi32>
    %73 = arith.addi %1, %72 : vector<8x256xi32>
    %c256_i32_25 = arith.constant 256 : i32
    %74 = vector.broadcast %c256_i32_25 : i32 to vector<8x256xi32>
    %75 = arith.cmpi slt, %73, %74 : vector<8x256xi32>
    %76 = arith.andi %71, %75 : vector<8x256xi1>
    %cst_26 = arith.constant 0.000000e+00 : f32
    %77 = vector.broadcast %cst_26 : f32 to vector<8x256xf32>
    %78 = arith.select %76, %67, %77 : vector<8x256xi1>, vector<8x256xf32>
    %cst_27 = arith.constant 2.500000e-01 : f32
    %79 = vector.broadcast %cst_27 : f32 to vector<8x256xf32>
    %80 = arith.mulf %79, %78 : vector<8x256xf32>
    %81 = arith.addf %66, %80 : vector<8x256xf32>
    %c0_28 = arith.constant 0 : index
    %c0_29 = arith.constant 0 : index
    %82 = vector.load %arg2[%c0_28, %c0_29] : memref<8x256xf32, #tpu.memory_space<vmem>>, vector<8x256xf32>
    tpu.vector_store %arg2[%c0_28, %c0_29], %81 {strides = array<i32>} : memref<8x256xf32, #tpu.memory_space<vmem>>, vector<8x256xf32>,
    return
  }
  func.func @transform_0(%arg0: i32) -> (i32, i32) {
    %c0_i32 = arith.constant 0 : i32
    %c0_i32_0 = arith.constant 0 : i32
    return %arg0, %c0_i32 : i32, i32
  }
  func.func @transform_1(%arg0: i32) -> (i32, i32) {
    %c0_i32 = arith.constant 0 : i32
    %c0_i32_0 = arith.constant 0 : i32
    return %arg0, %c0_i32 : i32, i32
  }
}

</mosaic_0001>

<llo_original>
// kernel: tpu_custom_call.1
$region0: #{tpu_custom_call.1}
  #allocation0 [shape = 'u32[]', space=smem, size = 0x4, offset = 0x4, fixed_abs, tag = 'smem constant byte address 0x4 - core index']
  #allocation1 [shape = 'u32[144,128]{1,0:T(1,128)}', space=vmem, size = 0x12000, scoped, tag = 'internal scratch']
  %s0 = inlined_call_operand.hbm [shape: f32[8,256], index: 0, kind: input, shape index: {}]
  %s1 = inlined_call_operand.hbm [shape: f32[8,256], index: 1, kind: output, shape index: {}]
  %s2 = sld [smem:[#allocation0]]
  $region18: #{tpu_custom_call.1} parent=0
    _
  %s4 = ssub.s32 1, %s2
  %s5 = scalar_select 0, %s4, %s2
  $region1: #{tpu_custom_call.1} parent=0
    #allocation2 [shape = 'u8[8192]{0}', space=vmem, size = 0x2000, scoped, tag = 'input window, operand 0, single buffered']
    #allocation3 [shape = 's32[1]{0}', space=sflag, size = 0x4, scoped, tag = 'scoped memory for tpu_custom_call.1']
    #allocation4 [shape = 's32[1]{0}', space=sflag, size = 0x4, scoped, tag = 'scoped memory for tpu_custom_call.1']
    #allocation5 [shape = 'u8[8192]{0}', space=vmem, size = 0x2000, scoped, tag = 'output window, operand 0, single buffered']
    %6 = vsyncpa [#allocation3], 0
    %7 = vsyncpa [#allocation4], 0
    // Predicated region
    $region2: #{tpu_custom_call.1} parent=1 // pred_check
      _
    $region3: #{tpu_custom_call.1} parent=1 // pred_check_branch
      %9 = sbr.rel (0) target = $region5
    $region4: #{tpu_custom_call.1} parent=1 // pred_region
      %s11 = ssub.s32 256, 256
      %12 = vsyncadd [#allocation3], %s11
      %s14 = sshll.u32 [#allocation2], 4
      %s15 = int_to_ptr.vmem [resolvable:$true] %s14
      %17 = dma.hbm_to_vmem [thread:$0]  %s0, 256, %s15, [#allocation3]
    $region5: #{tpu_custom_call.1} parent=1 // pred_fallthru
      _
    // Predicated region
    $region6: #{tpu_custom_call.1} parent=1 // pred_check
      _
    $region7: #{tpu_custom_call.1} parent=1 // pred_check_branch
      %19 = sbr.rel (0) target = $region9
    $region8: #{tpu_custom_call.1} parent=1 // pred_region
      %20 = dma.done [#allocation3], 256
    $region9: #{tpu_custom_call.1} parent=1 // pred_fallthru
      _
    %v21 = vld [vmem:[#allocation2] sm:$0xff]
    %v22 = vld [vmem:[#allocation2 + $0x8] sm:$0xff]
    %v23 = vlaneseq
    %v24 = vand.u32 %v23, 127
    %v25 = vadd.s32 %v24, 128
    %vm26 = vcmp.lt.s32.totalorder %v24, 0
    %v27 = vsub.s32 0, %v24
    %v28 = vsel %vm26, %v27, %v24
    %v29 = vshrl.u32 %v28, 4
    %v30 = vand.u32 %v28, 15
    %v31 = vsub.s32 0, %v30
    %v32 = vsel %vm26, %v31, %v30
    %vm33 = vcmp.lt.s32.totalorder %v25, 0
    %v34 = vsub.s32 0, %v25
    %v35 = vsel %vm33, %v34, %v25
    %v36 = vshrl.u32 %v35, 4
    %v37 = vand.u32 %v35, 15
    %v38 = vsub.s32 0, %v37
    %v39 = vsel %vm33, %v38, %v37
    %vm40 = vcmp.ne.s32.totalorder %v32, 0
    %vm41 = vcmp.ne.s32.totalorder %v39, 0
    %vm42 = vcmp.lt.s32.totalorder %v32, 0
    %vm43 = vcmp.lt.s32.totalorder %v39, 0
    %vm44 = vmand %vm42, %vm40
    %vm45 = vmand %vm43, %vm41
    %v46 = vadd.s32 %v32, 16
    %v47 = vadd.s32 %v39, 16
    %v48 = vsel %vm44, %v46, %v32
    %v49 = vsel %vm45, %v47, %v39
    %v50 = vmul.f32 %v21, 0.5
    %v51 = vmul.f32 %v22, 0.5
    %52 = vrot.lane.b32.xlu0 %v21, 1
    %v53 = vpop.permute.xlu0 %52
    %54 = vrot.lane.b32.xlu0 %v22, 1
    %v55 = vpop.permute.xlu0 %54
    %vm56 = vcmp.lt.s32.totalorder %v24, 1
    %v57 = vsel %vm56, %v53, %v55
    %v58 = vsel %vm56, %v55, %v53
    %v59 = vadd.s32 %v48, 4294967295
    %v60 = vadd.s32 %v49, 4294967295
    %vm61 = vcmp.ge.s32.totalorder %v59, 0
    %vm62 = vcmp.ge.s32.totalorder %v60, 0
    %vm63 = vcmp.lt.s32.totalorder %v59, 16
    %vm64 = vcmp.lt.s32.totalorder %v60, 16
    %vm65 = vmand %vm61, %vm63
    %vm66 = vmand %vm62, %vm64
    %v67 = vsel %vm65, %v58, 0.0
    %v68 = vsel %vm66, %v57, 0.0
    %v69 = vmul.f32 %v67, 0.25
    %v70 = vmul.f32 %v68, 0.25
    %v71 = vadd.f32 %v50, %v69
    %v72 = vadd.f32 %v51, %v70
    %73 = vrot.lane.b32.xlu0 %v21, 127
    %v74 = vpop.permute.xlu0 %73
    %75 = vrot.lane.b32.xlu0 %v22, 127
    %v76 = vpop.permute.xlu0 %75
    %vm77 = vcmp.lt.s32.totalorder %v24, 127
    %v78 = vsel %vm77, %v74, %v76
    %v79 = vsel %vm77, %v76, %v74
    %v80 = vadd.s32 %v48, 1
    %v81 = vadd.s32 %v49, 1
    %vm82 = vcmp.ge.s32.totalorder %v80, 0
    %vm83 = vcmp.ge.s32.totalorder %v81, 0
    %vm84 = vcmp.lt.s32.totalorder %v80, 16
    %vm85 = vcmp.lt.s32.totalorder %v81, 16
    %vm86 = vmand %vm82, %vm84
    %vm87 = vmand %vm83, %vm85
    %v88 = vsel %vm86, %v78, 0.0
    %v89 = vsel %vm87, %v79, 0.0
    %v90 = vmul.f32 %v88, 0.25
    %v91 = vmul.f32 %v89, 0.25
    %v92 = vadd.f32 %v71, %v90
    %v93 = vadd.f32 %v72, %v91
    %v94 = vmul.f32 %v92, 0.5
    %v95 = vmul.f32 %v93, 0.5
    %96 = vrot.lane.b32.xlu0 %v92, 16
    %v97 = vpop.permute.xlu0 %96
    %98 = vrot.lane.b32.xlu0 %v93, 16
    %v99 = vpop.permute.xlu0 %98
    %vm100 = vcmp.lt.s32.totalorder %v24, 16
    %v101 = vsel %vm100, %v97, %v99
    %v102 = vsel %vm100, %v99, %v97
    %v103 = vadd.s32 %v24, 4294967280
    %v104 = vadd.s32 %v25, 4294967280
    %vm105 = vcmp.ge.s32.totalorder %v103, 0
    %vm106 = vcmp.ge.s32.totalorder %v104, 0
    %vm107 = vcmp.lt.s32.totalorder %v103, 256
    %vm108 = vcmp.lt.s32.totalorder %v104, 256
    %vm109 = vmand %vm105, %vm107
    %vm110 = vmand %vm106, %vm108
    %v111 = vsel %vm109, %v102, 0.0
    %v112 = vsel %vm110, %v101, 0.0
    %v113 = vmul.f32 %v111, 0.25
    %v114 = vmul.f32 %v112, 0.25
    %v115 = vadd.f32 %v94, %v113
    %v116 = vadd.f32 %v95, %v114
    %117 = vrot.lane.b32.xlu0 %v92, 112
    %v118 = vpop.permute.xlu0 %117
    %119 = vrot.lane.b32.xlu0 %v93, 112
    %v120 = vpop.permute.xlu0 %119
    %vm121 = vcmp.lt.s32.totalorder %v24, 112
    %v122 = vsel %vm121, %v118, %v120
    %v123 = vsel %vm121, %v120, %v118
    %v124 = vadd.s32 %v24, 16
    %v125 = vadd.s32 %v25, 16
    %vm126 = vcmp.ge.s32.totalorder %v124, 0
    %vm127 = vcmp.ge.s32.totalorder %v125, 0
    %vm128 = vcmp.lt.s32.totalorder %v124, 256
    %vm129 = vcmp.lt.s32.totalorder %v125, 256
    %vm130 = vmand %vm126, %vm128
    %vm131 = vmand %vm127, %vm129
    %v132 = vsel %vm130, %v122, 0.0
    %v133 = vsel %vm131, %v123, 0.0
    %v134 = vmul.f32 %v132, 0.25
    %v135 = vmul.f32 %v133, 0.25
    %v136 = vadd.f32 %v115, %v134
    %v137 = vadd.f32 %v116, %v135
    %138 = vst [vmem:[#allocation5] sm:$0xff] %v136
    %139 = vst [vmem:[#allocation5 + $0x8] sm:$0xff] %v137
    // Predicated region
    $region10: #{tpu_custom_call.1} parent=1 // pred_check
      _
    $region11: #{tpu_custom_call.1} parent=1 // pred_check_branch
      %141 = sbr.rel (0) target = $region13
    $region12: #{tpu_custom_call.1} parent=1 // pred_region
      %s143 = ssub.s32 256, 256
      %144 = vsyncadd [#allocation4], %s143
      %s146 = sshll.u32 [#allocation5], 4
      %s147 = int_to_ptr.vmem [resolvable:$true] %s146
      %149 = dma.vmem_to_hbm [thread:$0]  %s147, 256, %s1, [#allocation4]
    $region13: #{tpu_custom_call.1} parent=1 // pred_fallthru
      _
    // Predicated region
    $region14: #{tpu_custom_call.1} parent=1 // pred_check
      _
    $region15: #{tpu_custom_call.1} parent=1 // pred_check_branch
      %151 = sbr.rel (0) target = $region17
    $region16: #{tpu_custom_call.1} parent=1 // pred_region
      %152 = dma.done [#allocation4], 256
    $region17: #{tpu_custom_call.1} parent=1 // pred_fallthru
      _
    %153 = vsyncpa [#allocation3], 1
    %154 = vsyncpa [#allocation4], 1

</llo_original>
